<compile_context>
chip_gen: v5e
topology: v5e:2x2
jax: 0.10.0
libtpu: 0.0.40
codegen_flags: <defaults>
</compile_context>

<pallas_src>
from functools import partial

import jax
import jax.numpy as jnp
from jax.experimental import pallas as pl
from jax.experimental.pallas import tpu as pltpu


_LANE = 128
_VMEM_BUDGET = 24 << 20        # target double-buffered working set
_VMEM_LIMIT = 32 << 20         # scoped VMEM limit handed to Mosaic
_TARGET_OUT_BYTES = 4 << 20    # ~4 MiB of output HBM traffic per grid step


def _round_up(n, mult):
    return ((n + mult - 1) // mult) * mult


def _sublane(dtype):
    # Dtype-aware sublane multiple: 8 for f32, 16 for bf16/f16, 32 for int8/fp8.
    itemsize = jnp.dtype(dtype).itemsize
    return 8 * max(1, 4 // itemsize)


def _compiler_params():
    return pltpu.CompilerParams(
        dimension_semantics=("parallel",),
        vmem_limit_bytes=_VMEM_LIMIT,
    )


# --------------------------------------------------------------------------
# Kernels (purely HBM-bandwidth bound; one vmul per vreg).
# --------------------------------------------------------------------------

def _mask_kernel(x_ref, m_ref, o_ref):
    # out = x * m   (elementwise on a flat, lane-dense tile)
    o_ref[...] = x_ref[...] * m_ref[...]


def _mask_append_kernel(x_ref, m_ref, o_ref):
    # out[:, :F] = x * m ; out[:, F:] = m   (concat done in-kernel).
    f = x_ref.shape[-1]
    m = m_ref[...]
    xm = x_ref[...] * m
    if f % _LANE == 0:
        # Lane-aligned halves: two unmasked, lane-dense slice stores.
        o_ref[:, :f] = xm
        o_ref[:, f:] = m
    else:
        # Narrow / unaligned F: assemble the (rows, 2F) tile in registers and
        # store once.  Cost is hidden under the DMA on this mem-bound op.
        o_ref[...] = jnp.concatenate([xm, m], axis=-1)


# --------------------------------------------------------------------------
# append=True path: (B, F) x (B, F) -> (B, 2F), row-tiled, full-width blocks.
# --------------------------------------------------------------------------

def _mask_append(x, m, block_rows):
    B, F = x.shape
    itemsize = jnp.dtype(x.dtype).itemsize
    sub = _sublane(x.dtype)

    if block_rows is None:
        # VMEM bytes per block row: x + m inputs and the output tile, all
        # lane-padded, each double-buffered by the BlockSpec pipeline.
        vmem_per_row = 2 * (2 * _round_up(F, _LANE)
                            + _round_up(2 * F, _LANE)) * itemsize
        out_per_row = 2 * F * itemsize
        block_rows = max(1, min(_VMEM_BUDGET // vmem_per_row,
                                max(1, _TARGET_OUT_BYTES // out_per_row)))
        if B >= 8 * sub:
            # Keep >= ~8 grid steps on large batches (v7x has 2 TensorCores).
            block_rows = min(block_rows, pl.cdiv(B, 8))

    if block_rows >= B:
        block_rows = B                                   # full-extent block
    else:
        block_rows = max(sub, (block_rows // sub) * sub)  # sublane multiple

    grid = (pl.cdiv(B, block_rows),)
    in_spec = pl.BlockSpec((block_rows, F), lambda i: (i, 0))
    out_spec = pl.BlockSpec((block_rows, 2 * F), lambda i: (i, 0))

    cost = pl.CostEstimate(
        flops=B * F,
        transcendentals=0,
        bytes_accessed=4 * B * F * itemsize,   # read x, m; write (B, 2F)
    )

    return pl.pallas_call(
        _mask_append_kernel,
        out_shape=jax.ShapeDtypeStruct((B, 2 * F), x.dtype),
        grid_spec=pl.GridSpec(grid=grid,
                              in_specs=[in_spec, in_spec],
                              out_specs=out_spec),
        compiler_params=_compiler_params(),
        cost_estimate=cost,
    )(x, m)


# --------------------------------------------------------------------------
# append=False path: flat 1-D lane-dense tiling (contiguous DMA, unmasked vst).
# --------------------------------------------------------------------------

def _mask_flat(x, m, block_elems):
    B, F = x.shape
    n = B * F
    itemsize = jnp.dtype(x.dtype).itemsize
    align = _sublane(x.dtype) * _LANE          # one full packed (sublane,lane) tile

    xf = x.reshape(n)                          # metadata-only for row-major
    mf = m.reshape(n)

    if block_elems is None:
        block_elems = max(align, min(_VMEM_BUDGET // (2 * 3 * itemsize),
                                     max(align, _TARGET_OUT_BYTES // itemsize)))
        if n >= 8 * align:
            block_elems = min(block_elems, pl.cdiv(n, 8))

    if block_elems >= n:
        block_elems = n                                      # full-extent block
    else:
        block_elems = max(align, (block_elems // align) * align)

    grid = (pl.cdiv(n, block_elems),)
    spec = pl.BlockSpec((block_elems,), lambda i: (i,))

    cost = pl.CostEstimate(
        flops=n,
        transcendentals=0,
        bytes_accessed=3 * n * itemsize,
    )

    out = pl.pallas_call(
        _mask_kernel,
        out_shape=jax.ShapeDtypeStruct((n,), x.dtype),
        grid_spec=pl.GridSpec(grid=grid, in_specs=[spec, spec], out_specs=spec),
        compiler_params=_compiler_params(),
        cost_estimate=cost,
    )(xf, mf)
    return out.reshape(B, F)


# --------------------------------------------------------------------------
# Public wrapper == MaskLayer.forward(x, m)
# --------------------------------------------------------------------------

@partial(jax.jit, static_argnames=("append", "block_rows", "block_elems"))
def mask_layer(x, m, append=True, block_rows=None, block_elems=None):
    """Pallas implementation of MaskLayer.forward(x, m)."""
    assert x.ndim == 2 and x.shape == m.shape, (x.shape, m.shape)
    if m.dtype != x.dtype:
        m = m.astype(x.dtype)          # e.g. boolean masks -> x.dtype
    if append:
        return _mask_append(x, m, block_rows)
    return _mask_flat(x, m, block_elems)


if __name__ == "__main__":
    # MaskLayer has no learned parameters (append / mask_size are config only).
    key = jax.random.PRNGKey(0)
    kx, km, kx2, km2, kx3, km3 = jax.random.split(key, 6)

    # Case 1: typical ragged tabular shape (F not a multiple of 128).
    B, F = 10, 20
    x = jax.random.normal(kx, (B, F), dtype=jnp.float32)
    m = (jax.random.uniform(km, (B, F)) > 0.5).astype(jnp.float32)

    out_append = jax.block_until_ready(mask_layer(x, m, append=True))
    ref_append = jnp.concatenate([x * m, m], axis=1)
    assert out_append.shape == (B, 2 * F)
    assert jnp.allclose(out_append, ref_append, atol=1e-6)

    out_plain = jax.block_until_ready(mask_layer(x, m, append=False))
    assert out_plain.shape == (B, F)
    assert jnp.allclose(out_plain, x * m, atol=1e-6)

    # Boolean mask input (dtype promotion handled in the wrapper).
    out_bool = jax.block_until_ready(mask_layer(x, m.astype(bool), append=True))
    assert jnp.allclose(out_bool, ref_append, atol=1e-6)

    # Case 2: (8,128)-aligned shape (lane-aligned slice-store path).
    B2, F2 = 8, 128
    x2 = jax.random.normal(kx2, (B2, F2), dtype=jnp.float32)
    m2 = (jax.random.uniform(km2, (B2, F2)) > 0.5).astype(jnp.float32)
    out2 = jax.block_until_ready(mask_layer(x2, m2, append=True))
    assert jnp.allclose(out2, jnp.concatenate([x2 * m2, m2], axis=1), atol=1e-6)
    out2p = jax.block_until_ready(mask_layer(x2, m2, append=False))
    assert jnp.allclose(out2p, x2 * m2, atol=1e-6)

    # Case 3: multi-step grids with ragged edge blocks on both paths.
    B3, F3 = 300, 20
    x3 = jax.random.normal(kx3, (B3, F3), dtype=jnp.float32)
    m3 = (jax.random.uniform(km3, (B3, F3)) > 0.5).astype(jnp.float32)
    out3 = jax.block_until_ready(mask_layer(x3, m3, append=True, block_rows=32))
    assert jnp.allclose(out3, jnp.concatenate([x3 * m3, m3], axis=1), atol=1e-6)
    out3p = jax.block_until_ready(mask_layer(x3, m3, append=False, block_elems=1024))
    assert jnp.allclose(out3p, x3 * m3, atol=1e-6)

    print("KERNEL_OK")
</pallas_src>

<mosaic_0001>
module attributes {stable_mosaic.version = 11 : i64} {
  func.func @_mask_append_kernel(%arg0: i32, %arg1: memref<10x20xf32, #tpu.memory_space<vmem>>, %arg2: memref<10x20xf32, #tpu.memory_space<vmem>>, %arg3: memref<10x40xf32, #tpu.memory_space<vmem>>) attributes {dimension_semantics = [#tpu.dimension_semantics<parallel>], iteration_bounds = array<i64: 1>, scalar_prefetch = 0 : i64, scratch_operands = 0 : i64, tpu.core_type = #tpu.core_type<tc>, window_params = [{transform_indices = @transform_0, window_bounds = array<i64: 10, 20>}, {transform_indices = @transform_1, window_bounds = array<i64: 10, 20>}, {transform_indices = @transform_2, window_bounds = array<i64: 10, 40>}]} {
    %c0 = arith.constant 0 : index
    %c0_0 = arith.constant 0 : index
    %0 = vector.load %arg2[%c0, %c0_0] : memref<10x20xf32, #tpu.memory_space<vmem>>, vector<10x20xf32>
    %c0_1 = arith.constant 0 : index
    %c0_2 = arith.constant 0 : index
    %1 = vector.load %arg1[%c0_1, %c0_2] : memref<10x20xf32, #tpu.memory_space<vmem>>, vector<10x20xf32>
    %2 = arith.mulf %1, %0 : vector<10x20xf32>
    %3 = tpu.concatenate %2, %0 in 1 : vector<10x20xf32>, vector<10x20xf32> -> vector<10x40xf32>
    %c0_3 = arith.constant 0 : index
    %c0_4 = arith.constant 0 : index
    %4 = vector.load %arg3[%c0_3, %c0_4] : memref<10x40xf32, #tpu.memory_space<vmem>>, vector<10x40xf32>
    tpu.vector_store %arg3[%c0_3, %c0_4], %3 {strides = array<i32>} : memref<10x40xf32, #tpu.memory_space<vmem>>, vector<10x40xf32>,
    return
  }
  func.func @transform_0(%arg0: i32) -> (i32, i32) {
    %c0_i32 = arith.constant 0 : i32
    %c0_i32_0 = arith.constant 0 : i32
    return %arg0, %c0_i32 : i32, i32
  }
  func.func @transform_1(%arg0: i32) -> (i32, i32) {
    %c0_i32 = arith.constant 0 : i32
    %c0_i32_0 = arith.constant 0 : i32
    return %arg0, %c0_i32 : i32, i32
  }
  func.func @transform_2(%arg0: i32) -> (i32, i32) {
    %c0_i32 = arith.constant 0 : i32
    %c0_i32_0 = arith.constant 0 : i32
    return %arg0, %c0_i32 : i32, i32
  }
}

</mosaic_0001>

<llo_original>
// kernel: mask_layer.1
$region0: #{mask_layer.1}
  #allocation0 [shape = 'u32[]', space=smem, size = 0x4, offset = 0x4, fixed_abs, tag = 'smem constant byte address 0x4 - core index']
  #allocation1 [shape = 'u32[72,128]{1,0:T(1,128)}', space=vmem, size = 0x9000, scoped, tag = 'internal scratch']
  %s0 = inlined_call_operand.hbm [shape: f32[10,20], index: 0, kind: input, shape index: {}]
  %s1 = inlined_call_operand.hbm [shape: f32[10,20], index: 1, kind: input, shape index: {}]
  %s2 = inlined_call_operand.hbm [shape: f32[10,40], index: 2, kind: output, shape index: {}]
  %s3 = sld [smem:[#allocation0]]
  $region26: #{mask_layer.1} parent=0
    _
  %s5 = ssub.s32 1, %s3
  %s6 = scalar_select 0, %s5, %s3
  $region1: #{mask_layer.1} parent=0
    #allocation2 [shape = 'u8[8192]{0}', space=vmem, size = 0x2000, scoped, tag = 'input window, operand 0, single buffered']
    #allocation3 [shape = 's32[1]{0}', space=sflag, size = 0x4, scoped, tag = 'scoped memory for mask_layer.1']
    #allocation4 [shape = 's32[1]{0}', space=sflag, size = 0x4, scoped, tag = 'scoped memory for mask_layer.1']
    #allocation5 [shape = 'u8[8192]{0}', space=vmem, size = 0x2000, scoped, tag = 'input window, operand 1, single buffered']
    #allocation6 [shape = 's32[1]{0}', space=sflag, size = 0x4, scoped, tag = 'scoped memory for mask_layer.1']
    #allocation7 [shape = 'u8[8192]{0}', space=vmem, size = 0x2000, scoped, tag = 'output window, operand 0, single buffered']
    %7 = vsyncpa [#allocation3], 0
    %8 = vsyncpa [#allocation6], 0
    %9 = vsyncpa [#allocation4], 0
    // Predicated region
    $region2: #{mask_layer.1} parent=1 // pred_check
      _
    $region3: #{mask_layer.1} parent=1 // pred_check_branch
      %11 = sbr.rel (0) target = $region5
    $region4: #{mask_layer.1} parent=1 // pred_region
      %13 = vsyncadd [#allocation3], 0
      %s14 = sshll.u32 %s0, 4
      %s15 = int_to_ptr.hbm [resolvable:$true] %s14
      %s16 = sshll.u32 [#allocation2], 4
      %s17 = int_to_ptr.vmem [resolvable:$true] %s16
      %22 = dma.hbm_to_vmem [thread:$0]  %s15, 256, %s17, [#allocation3], 128, 128, 8
    $region5: #{mask_layer.1} parent=1 // pred_fallthru
      _
    // Predicated region
    $region6: #{mask_layer.1} parent=1 // pred_check
      _
    $region7: #{mask_layer.1} parent=1 // pred_check_branch
      %24 = sbr.rel (0) target = $region9
    $region8: #{mask_layer.1} parent=1 // pred_region
      %26 = vsyncadd [#allocation6], 0
      %s27 = sshll.u32 %s1, 4
      %s28 = int_to_ptr.hbm [resolvable:$true] %s27
      %s29 = sshll.u32 [#allocation5], 4
      %s30 = int_to_ptr.vmem [resolvable:$true] %s29
      %35 = dma.hbm_to_vmem [thread:$0]  %s28, 256, %s30, [#allocation6], 128, 128, 8
    $region9: #{mask_layer.1} parent=1 // pred_fallthru
      _
    // Predicated region
    $region10: #{mask_layer.1} parent=1 // pred_check
      _
    $region11: #{mask_layer.1} parent=1 // pred_check_branch
      %37 = sbr.rel (0) target = $region13
    $region12: #{mask_layer.1} parent=1 // pred_region
      %39 = dma.done [#allocation3], 256
    $region13: #{mask_layer.1} parent=1 // pred_fallthru
      _
    // Predicated region
    $region14: #{mask_layer.1} parent=1 // pred_check
      _
    $region15: #{mask_layer.1} parent=1 // pred_check_branch
      %41 = sbr.rel (0) target = $region17
    $region16: #{mask_layer.1} parent=1 // pred_region
      %43 = dma.done [#allocation6], 256
    $region17: #{mask_layer.1} parent=1 // pred_fallthru
      _
    %v44 = vld [vmem:[#allocation5] sm:$0xff]
    %v45 = vld [vmem:[#allocation5 + $0x8] sm:$0x3]
    %v46 = vld [vmem:[#allocation2] sm:$0xff]
    %v47 = vld [vmem:[#allocation2 + $0x8] sm:$0x3]
    %v48 = vmul.f32 %v46, %v44
    %v49 = vmul.f32 %v47, %v45
    %52 = vrot.lane.b32.xlu0 %v44, 20
    %v53 = vpop.permute.xlu0 %52
    %54 = vrot.lane.b32.xlu0 %v45, 20
    %v55 = vpop.permute.xlu0 %54
    %vm58 = vcmask 162816
    %v59 = vsel %vm58, %v48, %v53
    %v60 = vsel %vm58, %v49, %v55
    %vm61 = vcmask 326656
    %62 = vst.msk [vmem:[#allocation7] sm:$0xff] %vm61, %v59
    %vm63 = vcmask 320512
    %64 = vst.msk [vmem:[#allocation7 + $0x8] sm:$0x3] %vm63, %v60
    // Predicated region
    $region18: #{mask_layer.1} parent=1 // pred_check
      _
    $region19: #{mask_layer.1} parent=1 // pred_check_branch
      %66 = sbr.rel (0) target = $region21
    $region20: #{mask_layer.1} parent=1 // pred_region
      %68 = vsyncadd [#allocation4], 0
      %s69 = sshll.u32 [#allocation7], 4
      %s70 = int_to_ptr.vmem [resolvable:$true] %s69
      %s71 = sshll.u32 %s2, 4
      %s72 = int_to_ptr.hbm [resolvable:$true] %s71
      %77 = dma.vmem_to_hbm [thread:$0]  %s70, 256, %s72, [#allocation4], 128, 128, 8
    $region21: #{mask_layer.1} parent=1 // pred_fallthru
      _
    // Predicated region
    $region22: #{mask_layer.1} parent=1 // pred_check
      _
    $region23: #{mask_layer.1} parent=1 // pred_check_branch
      %79 = sbr.rel (0) target = $region25
    $region24: #{mask_layer.1} parent=1 // pred_region
      %81 = dma.done [#allocation4], 256
    $region25: #{mask_layer.1} parent=1 // pred_fallthru
      _
    %82 = vsyncpa [#allocation3], 1
    %83 = vsyncpa [#allocation6], 1
    %84 = vsyncpa [#allocation4], 1

</llo_original>
